<compile_context>
chip_gen: v7x
topology: tpu7x:2x2x1
jax: 0.10.0
libtpu: 0.0.40
codegen_flags: <defaults>
</compile_context>

<pallas_src>
import functools

import jax
import jax.numpy as jnp
from jax.experimental import pallas as pl
from jax.experimental.pallas import tpu as pltpu

_LANE = 128


def _vmem_limit_bytes():
    """Per-generation VMEM budget: half of physical, clamped to [32, 100] MiB."""
    cap = 64 * 1024 * 1024
    try:
        cap = int(getattr(pltpu.get_tpu_info(), "vmem_capacity_bytes", cap))
    except Exception:
        pass
    return int(min(max(cap // 2, 32 * 1024 * 1024), 100 * 1024 * 1024))


def _pick_tile(n, desired):
    """Largest multiple of 128 that divides n and is <= desired (n must be a multiple of 128)."""
    best = _LANE
    t = _LANE
    while t <= min(desired, n):
        if n % t == 0:
            best = t
        t += _LANE
    return best


# --------------------------------------------------------------------------- support = feat @ W
def _support_kernel(feat_ref, w_ref, out_ref):
    f = feat_ref[...].astype(jnp.bfloat16)
    w = w_ref[...].astype(jnp.bfloat16)
    out_ref[...] = jnp.dot(f, w, preferred_element_type=jnp.float32).astype(out_ref.dtype)


def _support(feat, w, *, tile_m, vmem_limit):
    n, d_in = feat.shape
    d_out = w.shape[1]
    return pl.pallas_call(
        _support_kernel,
        out_shape=jax.ShapeDtypeStruct((n, d_out), jnp.bfloat16),
        grid_spec=pltpu.PrefetchScalarGridSpec(
            num_scalar_prefetch=0,
            grid=(n // tile_m,),
            in_specs=[
                pl.BlockSpec((tile_m, d_in), lambda i: (i, 0)),   # feature row tile
                pl.BlockSpec((d_in, d_out), lambda i: (0, 0)),    # weights (resident)
            ],
            out_specs=pl.BlockSpec((tile_m, d_out), lambda i: (i, 0)),
        ),
        compiler_params=pltpu.CompilerParams(
            dimension_semantics=("parallel",),
            vmem_limit_bytes=vmem_limit,
        ),
    )(feat, w)


# --------------------------------------------------------------------------- out = act(adj @ support)
def _spmm_kernel(adj_ref, sup_ref, out_ref, acc_ref, *, apply_relu, tile_k, support_resident):
    k = pl.program_id(1)

    @pl.when(k == 0)
    def _():
        acc_ref[...] = jnp.zeros_like(acc_ref)

    # adj streamed as f32 and cast per tile (cheap VPU op, hides under the MXU/DMA);
    # avoids a separate wrapper-level N^2 cast pass over HBM for a one-shot forward.
    adj = adj_ref[...].astype(jnp.bfloat16)
    if support_resident:
        start = pl.multiple_of(k * tile_k, tile_k)
        sup = sup_ref[pl.ds(start, tile_k), :]
    else:
        sup = sup_ref[...]
    acc_ref[...] += jnp.dot(adj, sup, preferred_element_type=jnp.float32)

    @pl.when(k == pl.num_programs(1) - 1)
    def _():
        res = acc_ref[...]
        if apply_relu:
            res = jnp.maximum(res, 0.0)
        out_ref[...] = res.astype(out_ref.dtype)


def _gcn_aggregate(adj, support, *, apply_relu, out_dtype, tile_m, tile_k, vmem_limit):
    n = adj.shape[0]
    d_out = support.shape[1]

    # Keep the (N, d_out) bf16 support matrix fully VMEM-resident (DMA'd once, constant
    # index_map) when it fits a small slice of the budget; otherwise stream k-tiles.
    support_resident = n * d_out * support.dtype.itemsize * 2 <= vmem_limit // 4
    if support_resident:
        sup_spec = pl.BlockSpec((n, d_out), lambda i, k: (0, 0))
    else:
        sup_spec = pl.BlockSpec((tile_k, d_out), lambda i, k: (k, 0))

    return pl.pallas_call(
        functools.partial(_spmm_kernel, apply_relu=apply_relu, tile_k=tile_k,
                          support_resident=support_resident),
        out_shape=jax.ShapeDtypeStruct((n, d_out), out_dtype),
        grid_spec=pltpu.PrefetchScalarGridSpec(
            num_scalar_prefetch=0,
            grid=(n // tile_m, n // tile_k),
            in_specs=[
                pl.BlockSpec((tile_m, tile_k), lambda i, k: (i, k)),   # adj tile (f32)
                sup_spec,                                              # support (bf16)
            ],
            out_specs=pl.BlockSpec((tile_m, d_out), lambda i, k: (i, 0)),
            scratch_shapes=[pltpu.VMEM((tile_m, d_out), jnp.float32)],
        ),
        compiler_params=pltpu.CompilerParams(
            dimension_semantics=("parallel", "arbitrary"),
            vmem_limit_bytes=vmem_limit,
        ),
    )(adj, support)


# --------------------------------------------------------------------------- recon = z @ z.T
def _decoder_kernel(z_row_ref, z_col_ref, recon_ref):
    # Cast z tiles to bf16 in-kernel (no extra wrapper HBM pass); fold the transpose into
    # the MXU contraction (both operands contract their lane axis) instead of an XLU xpose.
    zr = z_row_ref[...].astype(jnp.bfloat16)
    zc = z_col_ref[...].astype(jnp.bfloat16)
    recon_ref[...] = jax.lax.dot_general(
        zr, zc,
        dimension_numbers=(((1,), (1,)), ((), ())),
        preferred_element_type=jnp.float32,
    ).astype(recon_ref.dtype)


def _inner_product_decoder(z, *, tile_m, tile_n, vmem_limit):
    n, zp = z.shape
    return pl.pallas_call(
        _decoder_kernel,
        out_shape=jax.ShapeDtypeStruct((n, n), jnp.float32),
        grid_spec=pltpu.PrefetchScalarGridSpec(
            num_scalar_prefetch=0,
            grid=(n // tile_m, n // tile_n),
            in_specs=[
                pl.BlockSpec((tile_m, zp), lambda i, j: (i, 0)),   # z row tile (f32)
                pl.BlockSpec((tile_n, zp), lambda i, j: (j, 0)),   # z "column" tile (f32)
            ],
            out_specs=pl.BlockSpec((tile_m, tile_n), lambda i, j: (i, j)),
        ),
        compiler_params=pltpu.CompilerParams(
            dimension_semantics=("parallel", "parallel"),
            vmem_limit_bytes=vmem_limit,
        ),
    )(z, z)


# --------------------------------------------------------------------------- wrapper
def _pad_axis(a, axis, mult):
    pad = (-a.shape[axis]) % mult
    if pad == 0:
        return a
    widths = [(0, 0)] * a.ndim
    widths[axis] = (0, pad)
    return jnp.pad(a, widths)


def gcn_model_ae_forward(x, adj, w1, w2):
    """GCN auto-encoder forward. Returns (reconstructions, z_mean)."""
    n, input_dim = x.shape
    hidden_dim = w1.shape[1]
    z_dim = w2.shape[1]
    assert adj.shape == (n, n)
    assert w1.shape == (input_dim, hidden_dim)
    assert w2.shape == (hidden_dim, z_dim)
    # TODO(synk): general N would need zero-padding of adj/x rows to a multiple of 128
    # (mathematically safe) or a pl.cdiv + masking path; not emitted here.
    assert n % _LANE == 0, "node count must be a multiple of 128"

    vmem_limit = _vmem_limit_bytes()

    # Row tile up to 512 but keep >=2 row tiles when possible (v7x megacore balance);
    # contraction tile up to 512 (multiple of 256 fills the v6e/v7x MXU).
    tile_m = _pick_tile(n, min(512, max(_LANE, n // 2)))
    tile_k = _pick_tile(n, 512)
    dec_tile = _pick_tile(n, min(512, max(_LANE, n // 2)))

    # Zero-pad hidden / z feature dims to the 128-lane width -> lane-dense stores.
    # Padding columns/rows are exact zeros: relu(0)=0 and zero columns contribute nothing
    # to z @ z.T, so the math is unchanged.
    w1_p = _pad_axis(w1, 1, _LANE)                       # (D_in, Hp)
    w2_p = _pad_axis(_pad_axis(w2, 0, _LANE), 1, _LANE)  # (Hp, Zp)

    # TODO(synk): dropout is a no-op here (eval mode, training=False), so it is not emitted.
    # Layer 1: support1 = x @ W1 (precomputed once), hidden = relu(adj @ support1).
    support1 = _support(x, w1_p, tile_m=tile_m, vmem_limit=vmem_limit)
    hidden = _gcn_aggregate(adj, support1, apply_relu=True, out_dtype=jnp.bfloat16,
                            tile_m=tile_m, tile_k=tile_k, vmem_limit=vmem_limit)
    # Layer 2: support2 = hidden @ W2, z = adj @ support2 (identity act, f32 output).
    support2 = _support(hidden, w2_p, tile_m=tile_m, vmem_limit=vmem_limit)
    z_pad = _gcn_aggregate(adj, support2, apply_relu=False, out_dtype=jnp.float32,
                           tile_m=tile_m, tile_k=tile_k, vmem_limit=vmem_limit)
    # InnerProductDecoder (act = identity): recon = z @ z.T; z cast to bf16 inside kernel.
    recon = _inner_product_decoder(z_pad, tile_m=dec_tile, tile_n=dec_tile,
                                   vmem_limit=vmem_limit)

    z_mean = z_pad[:, :z_dim]
    return recon, z_mean


# --------------------------------------------------------------------------- references
def _reference_forward_f32(x, adj, w1, w2):
    hidden = jnp.maximum(adj @ (x @ w1), 0.0)
    z = adj @ (hidden @ w2)
    return z @ z.T, z


def _reference_forward_bf16(x, adj, w1, w2):
    """Pure-JAX reference with the same bf16 cast points / f32 accumulation as the kernels."""
    bf, f32 = jnp.bfloat16, jnp.float32
    xb, ab, w1b, w2b = (t.astype(bf) for t in (x, adj, w1, w2))
    s1 = jnp.dot(xb, w1b, preferred_element_type=f32)
    h = jnp.maximum(jnp.dot(ab, s1.astype(bf), preferred_element_type=f32), 0.0)
    s2 = jnp.dot(h.astype(bf), w2b, preferred_element_type=f32)
    z = jnp.dot(ab, s2.astype(bf), preferred_element_type=f32)
    recon = jax.lax.dot_general(z.astype(bf), z.astype(bf),
                                dimension_numbers=(((1,), (1,)), ((), ())),
                                preferred_element_type=f32)
    return recon, z


if __name__ == "__main__":
    # Small synthetic problem consistent with the module's forward.
    N, INPUT_DIM, HIDDEN_DIM, Z_DIM = 128, 64, 32, 16

    key = jax.random.PRNGKey(0)
    kx, kadj, kw1, kw2 = jax.random.split(key, 4)

    # Node features.
    x = jax.random.normal(kx, (N, INPUT_DIM), dtype=jnp.float32)

    # Dense symmetric "normalized adjacency" stand-in (torch.spmm on a dense-equivalent adj).
    a = jax.random.uniform(kadj, (N, N), dtype=jnp.float32)
    a = (a + a.T) * 0.5 + jnp.eye(N, dtype=jnp.float32)
    deg = jnp.sum(a, axis=1, keepdims=True)
    adj = a / deg  # row-normalized

    # Glorot-style deterministic weight init (matches GraphConvolution parameter shapes).
    def glorot(k, shape):
        limit = jnp.sqrt(6.0 / (shape[0] + shape[1]))
        return jax.random.uniform(k, shape, jnp.float32, -limit, limit)

    w1 = glorot(kw1, (INPUT_DIM, HIDDEN_DIM))
    w2 = glorot(kw2, (HIDDEN_DIM, Z_DIM))

    recon, z_mean = gcn_model_ae_forward(x, adj, w1, w2)
    jax.block_until_ready((recon, z_mean))

    assert recon.shape == (N, N) and z_mean.shape == (N, Z_DIM)

    # Tight check against a reference with the same bf16 cast points (kernel structure).
    recon_bf, z_bf = _reference_forward_bf16(x, adj, w1, w2)
    assert jnp.allclose(recon, recon_bf, atol=1e-3, rtol=1e-3)
    assert jnp.allclose(z_mean, z_bf, atol=1e-3, rtol=1e-3)

    # Looser check against the pure-f32 module semantics (bf16 operand quantization is a
    # deliberate precision choice; flagged for downstream users).
    recon_f32, z_f32 = _reference_forward_f32(x, adj, w1, w2)
    assert jnp.allclose(recon, recon_f32, atol=3e-2, rtol=3e-2)
    assert jnp.allclose(z_mean, z_f32, atol=3e-2, rtol=3e-2)

    print("KERNEL_OK")
</pallas_src>

<mosaic_0001>
module attributes {stable_mosaic.version = 11 : i64} {
  func.func @_support_kernel(%arg0: i32, %arg1: memref<128x64xf32, #tpu.memory_space<vmem>>, %arg2: memref<64x128xf32, #tpu.memory_space<vmem>>, %arg3: memref<128x128xbf16, #tpu.memory_space<vmem>>) attributes {dimension_semantics = [#tpu.dimension_semantics<parallel>], iteration_bounds = array<i64: 1>, scalar_prefetch = 0 : i64, scratch_operands = 0 : i64, tpu.core_type = #tpu.core_type<tc>, window_params = [{transform_indices = @transform_0, window_bounds = array<i64: 128, 64>}, {pipeline_mode = #tpu.pipeline_mode<synchronous>, transform_indices = @transform_1, window_bounds = array<i64: 64, 128>}, {transform_indices = @transform_2, window_bounds = array<i64: 128, 128>}]} {
    %c0 = arith.constant 0 : index
    %c0_0 = arith.constant 0 : index
    %0 = vector.load %arg1[%c0, %c0_0] : memref<128x64xf32, #tpu.memory_space<vmem>>, vector<128x64xf32>
    %1 = arith.truncf %0 : vector<128x64xf32> to vector<128x64xbf16>
    %c0_1 = arith.constant 0 : index
    %c0_2 = arith.constant 0 : index
    %2 = vector.load %arg2[%c0_1, %c0_2] : memref<64x128xf32, #tpu.memory_space<vmem>>, vector<64x128xf32>
    %3 = arith.truncf %2 : vector<64x128xf32> to vector<64x128xbf16>
    %cst = arith.constant dense<0.000000e+00> : vector<128x128xf32>
    %4 = tpu.matmul %1, %3, %cst {dimension_numbers = #tpu.dot_dimension_numbers<[1], [0], [0], [1], [0, 0, 1, 1], [], []>} : vector<128x64xbf16>, vector<64x128xbf16>, vector<128x128xf32> -> vector<128x128xf32>
    %5 = arith.truncf %4 : vector<128x128xf32> to vector<128x128xbf16>
    %c0_3 = arith.constant 0 : index
    %c0_4 = arith.constant 0 : index
    %6 = vector.load %arg3[%c0_3, %c0_4] : memref<128x128xbf16, #tpu.memory_space<vmem>>, vector<128x128xbf16>
    tpu.vector_store %arg3[%c0_3, %c0_4], %5 {strides = array<i32>} : memref<128x128xbf16, #tpu.memory_space<vmem>>, vector<128x128xbf16>,
    return
  }
  func.func @transform_0(%arg0: i32) -> (i32, i32) {
    %c0_i32 = arith.constant 0 : i32
    %c0_i32_0 = arith.constant 0 : i32
    return %arg0, %c0_i32 : i32, i32
  }
  func.func @transform_1(%arg0: i32) -> (i32, i32) {
    %c0_i32 = arith.constant 0 : i32
    %c0_i32_0 = arith.constant 0 : i32
    %c0_i32_1 = arith.constant 0 : i32
    return %c0_i32, %c0_i32_0 : i32, i32
  }
  func.func @transform_2(%arg0: i32) -> (i32, i32) {
    %c0_i32 = arith.constant 0 : i32
    %c0_i32_0 = arith.constant 0 : i32
    return %arg0, %c0_i32 : i32, i32
  }
}

</mosaic_0001>

<llo_original>
// kernel: tpu_custom_call.1
$region0: #{tpu_custom_call.1}
  #allocation0 [shape = 'u32[]', space=smem, size = 0x4, offset = 0x4, fixed_abs, tag = 'smem constant byte address 0x4 - core index']
  #allocation1 [shape = 'u32[144,128]{1,0:T(1,128)}', space=vmem, size = 0x12000, scoped, tag = 'internal scratch']
  %s0 = inlined_call_operand.vmem [shape: f32[128,64], index: 0, kind: input, shape index: {}]
  %s1 = inlined_call_operand.vmem [shape: f32[64,128], index: 1, kind: input, shape index: {}]
  %s2 = inlined_call_operand.hbm [shape: bf16[128,128], index: 2, kind: output, shape index: {}]
  %s3 = sld [smem:[#allocation0]]
  $region18: #{tpu_custom_call.1} parent=0
    _
  %s5 = ssub.s32 1, %s3
  %s6 = scalar_select 0, %s5, %s3
  $region1: #{tpu_custom_call.1} parent=0
    #allocation2 [shape = 'u8[32768]{0}', space=vmem, size = 0x8000, scoped, tag = 'output window, operand 0, single buffered']
    #allocation3 [shape = 's32[1]{0}', space=sflag, size = 0x4, scoped, tag = 'scoped memory for tpu_custom_call.1']
    %7 = vsyncpa [#allocation3], 0
    // Predicated region
    $region2: #{tpu_custom_call.1} parent=1 // pred_check
      _
    $region3: #{tpu_custom_call.1} parent=1 // pred_check_branch
      %9 = sbr.rel (0) target = $region5
    $region4: #{tpu_custom_call.1} parent=1 // pred_region
      _
    $region5: #{tpu_custom_call.1} parent=1 // pred_fallthru
      _
    // Predicated region
    $region6: #{tpu_custom_call.1} parent=1 // pred_check
      _
    $region7: #{tpu_custom_call.1} parent=1 // pred_check_branch
      %11 = sbr.rel (0) target = $region9
    $region8: #{tpu_custom_call.1} parent=1 // pred_region
      _
    $region9: #{tpu_custom_call.1} parent=1 // pred_fallthru
      _
    %v13 = vld [vmem:[%s0] sm:$0xff]
    %v14 = vld [vmem:[%s0 + $0x8] sm:$0xff]
    %v15 = vld [vmem:[%s0 + $0x10] sm:$0xff]
    %v16 = vld [vmem:[%s0 + $0x18] sm:$0xff]
    %v17 = vld [vmem:[%s0 + $0x20] sm:$0xff]
    %v18 = vld [vmem:[%s0 + $0x28] sm:$0xff]
    %v19 = vld [vmem:[%s0 + $0x30] sm:$0xff]
    %v20 = vld [vmem:[%s0 + $0x38] sm:$0xff]
    %v21 = vld [vmem:[%s0 + $0x40] sm:$0xff]
    %v22 = vld [vmem:[%s0 + $0x48] sm:$0xff]
    %v23 = vld [vmem:[%s0 + $0x50] sm:$0xff]
    %v24 = vld [vmem:[%s0 + $0x58] sm:$0xff]
    %v25 = vld [vmem:[%s0 + $0x60] sm:$0xff]
    %v26 = vld [vmem:[%s0 + $0x68] sm:$0xff]
    %v27 = vld [vmem:[%s0 + $0x70] sm:$0xff]
    %v28 = vld [vmem:[%s0 + $0x78] sm:$0xff]
    %v29 = vpack.c.bf16 %v14, %v13
    %v30 = vpack.c.bf16 %v16, %v15
    %v31 = vpack.c.bf16 %v18, %v17
    %v32 = vpack.c.bf16 %v20, %v19
    %v33 = vpack.c.bf16 %v22, %v21
    %v34 = vpack.c.bf16 %v24, %v23
    %v35 = vpack.c.bf16 %v26, %v25
    %v36 = vpack.c.bf16 %v28, %v27
    %v37 = vld [vmem:[%s1] sm:$0xff]
    %v38 = vld [vmem:[%s1 + $0x8] sm:$0xff]
    %v39 = vld [vmem:[%s1 + $0x10] sm:$0xff]
    %v40 = vld [vmem:[%s1 + $0x18] sm:$0xff]
    %v41 = vld [vmem:[%s1 + $0x20] sm:$0xff]
    %v42 = vld [vmem:[%s1 + $0x28] sm:$0xff]
    %v43 = vld [vmem:[%s1 + $0x30] sm:$0xff]
    %v44 = vld [vmem:[%s1 + $0x38] sm:$0xff]
    %v45 = vpack.c.bf16 %v38, %v37
    %v46 = vpack.c.bf16 %v40, %v39
    %v47 = vpack.c.bf16 %v42, %v41
    %v48 = vpack.c.bf16 %v44, %v43
    %vm49 = vcmask 523264
    %v51 = vsel %vm49, %v29, 0
    %v54 = vsel %vm49, %v30, 0
    %v57 = vsel %vm49, %v31, 0
    %v60 = vsel %vm49, %v32, 0
    %v63 = vsel %vm49, %v33, 0
    %v66 = vsel %vm49, %v34, 0
    %v69 = vsel %vm49, %v35, 0
    %v72 = vsel %vm49, %v36, 0
    %74 = vmatprep.subr.bf16.mxu0 0
    %75 = vmatpush1.bf16.msra.mxu0 %v45
    %76 = vmatprep.subr.bf16.mxu0 0
    %77 = vmatpush1.bf16.msra.mxu0 %v46
    %78 = vmatprep.subr.bf16.mxu0 0
    %79 = vmatpush1.bf16.msra.mxu0 %v47
    %80 = vmatprep.subr.bf16.mxu0 0
    %81 = vmatpush1.bf16.msra.mxu0 %v48
    %82 = vmatprep.subr.bf16.mxu0 0
    %83 = vmatpush1.bf16.msra.mxu0 0
    %84 = vmatprep.subr.bf16.mxu0 0
    %85 = vmatpush1.bf16.msra.mxu0 0
    %86 = vmatprep.subr.bf16.mxu0 0
    %87 = vmatpush1.bf16.msra.mxu0 0
    %88 = vmatprep.subr.bf16.mxu0 0
    %89 = vmatpush1.bf16.msra.mxu0 0
    %90 = vmatprep.subr.bf16.mxu0 0
    %91 = vmatpush1.bf16.msra.mxu0 0
    %92 = vmatprep.subr.bf16.mxu0 0
    %93 = vmatpush1.bf16.msra.mxu0 0
    %94 = vmatprep.subr.bf16.mxu0 0
    %95 = vmatpush1.bf16.msra.mxu0 0
    %96 = vmatprep.subr.bf16.mxu0 0
    %97 = vmatpush1.bf16.msra.mxu0 0
    %98 = vmatprep.subr.bf16.mxu0 0
    %99 = vmatpush1.bf16.msra.mxu0 0
    %100 = vmatprep.subr.bf16.mxu0 0
    %101 = vmatpush1.bf16.msra.mxu0 0
    %102 = vmatprep.subr.bf16.mxu0 0
    %103 = vmatpush1.bf16.msra.mxu0 0
    %104 = vmatprep.subr.bf16.mxu0 0
    %105 = vmatpush1.bf16.msra.mxu0 0
    %106 = vmatprep.mubr.bf16.mxu0 0
    %107 = vmatmul.mubr.bf16.gmra.mrb[0].mxu0 %v51
    %v108 = vpop.f32.mrb[0].mxu0
    %v109 = vadd.f32 0.0, %v108
    %v110 = vpop.f32.mrb[0].mxu0
    %v111 = vpop.f32.mrb[0].mxu0
    %v112 = vadd.f32 0.0, %v111
    %v113 = vpop.f32.mrb[0].mxu0
    %114 = vmatprep.mubr.bf16.mxu0 0
    %115 = vmatmul.mubr.bf16.gmra.mrb[0].mxu0 %v54
    %v116 = vpop.f32.mrb[0].mxu0
    %v117 = vadd.f32 0.0, %v116
    %v118 = vpop.f32.mrb[0].mxu0
    %v119 = vpop.f32.mrb[0].mxu0
    %v120 = vadd.f32 0.0, %v119
    %v121 = vpop.f32.mrb[0].mxu0
    %122 = vmatprep.mubr.bf16.mxu0 0
    %123 = vmatmul.mubr.bf16.gmra.mrb[0].mxu0 %v57
    %v124 = vpop.f32.mrb[0].mxu0
    %v125 = vadd.f32 0.0, %v124
    %v126 = vpop.f32.mrb[0].mxu0
    %v127 = vpop.f32.mrb[0].mxu0
    %v128 = vadd.f32 0.0, %v127
    %v129 = vpop.f32.mrb[0].mxu0
    %130 = vmatprep.mubr.bf16.mxu0 0
    %131 = vmatmul.mubr.bf16.gmra.mrb[0].mxu0 %v60
    %v132 = vpop.f32.mrb[0].mxu0
    %v133 = vadd.f32 0.0, %v132
    %v134 = vpop.f32.mrb[0].mxu0
    %v135 = vpop.f32.mrb[0].mxu0
    %v136 = vadd.f32 0.0, %v135
    %v137 = vpop.f32.mrb[0].mxu0
    %138 = vmatprep.mubr.bf16.mxu0 0
    %139 = vmatmul.mubr.bf16.gmra.mrb[0].mxu0 %v63
    %v140 = vpop.f32.mrb[0].mxu0
    %v141 = vadd.f32 0.0, %v140
    %v142 = vpop.f32.mrb[0].mxu0
    %v143 = vpop.f32.mrb[0].mxu0
    %v144 = vadd.f32 0.0, %v143
    %v145 = vpop.f32.mrb[0].mxu0
    %146 = vmatprep.mubr.bf16.mxu0 0
    %147 = vmatmul.mubr.bf16.gmra.mrb[0].mxu0 %v66
    %v148 = vpop.f32.mrb[0].mxu0
    %v149 = vadd.f32 0.0, %v148
    %v150 = vpop.f32.mrb[0].mxu0
    %v151 = vpop.f32.mrb[0].mxu0
    %v152 = vadd.f32 0.0, %v151
    %v153 = vpop.f32.mrb[0].mxu0
    %154 = vmatprep.mubr.bf16.mxu0 0
    %155 = vmatmul.mubr.bf16.gmra.mrb[0].mxu0 %v69
    %v156 = vpop.f32.mrb[0].mxu0
    %v157 = vadd.f32 0.0, %v156
    %v158 = vpop.f32.mrb[0].mxu0
    %v159 = vpop.f32.mrb[0].mxu0
    %v160 = vadd.f32 0.0, %v159
    %v161 = vpop.f32.mrb[0].mxu0
    %162 = vmatprep.mubr.bf16.mxu0 0
    %163 = vmatmul.mubr.bf16.gmra.mrb[0].mxu0 %v72
    %v164 = vpop.f32.mrb[0].mxu0
    %v165 = vadd.f32 0.0, %v164
    %v166 = vpop.f32.mrb[0].mxu0
    %v167 = vpop.f32.mrb[0].mxu0
    %v168 = vadd.f32 0.0, %v167
    %v169 = vpop.f32.mrb[0].mxu0
    %170 = vdwg.mxu0
    %v171 = vpack.c.bf16 %v112, %v109
    %v172 = vpack.c.bf16 %v120, %v117
    %v173 = vpack.c.bf16 %v128, %v125
    %v174 = vpack.c.bf16 %v136, %v133
    %v175 = vpack.c.bf16 %v144, %v141
    %v176 = vpack.c.bf16 %v152, %v149
    %v177 = vpack.c.bf16 %v160, %v157
    %v178 = vpack.c.bf16 %v168, %v165
    %v187 = vunpack.c.l.b16 %v171
    %v188 = vunpack.c.h.b16 %v171
    %v189 = vunpack.c.l.b16 %v172
    %v190 = vunpack.c.h.b16 %v172
    %v191 = vunpack.c.l.b16 %v173
    %v192 = vunpack.c.h.b16 %v173
    %v193 = vunpack.c.l.b16 %v174
    %v194 = vunpack.c.h.b16 %v174
    %v195 = vunpack.c.l.b16 %v175
    %v196 = vunpack.c.h.b16 %v175
    %v197 = vunpack.c.l.b16 %v176
    %v198 = vunpack.c.h.b16 %v176
    %v199 = vunpack.c.l.b16 %v177
    %v200 = vunpack.c.h.b16 %v177
    %v201 = vunpack.c.l.b16 %v178
    %v202 = vunpack.c.h.b16 %v178
    %v203 = vpack.c.b16 %v187, %v187
    %v204 = vpack.c.b16 %v188, %v188
    %v205 = vpack.c.b16 %v189, %v189
    %v206 = vpack.c.b16 %v190, %v190
    %v207 = vpack.c.b16 %v191, %v191
    %v208 = vpack.c.b16 %v192, %v192
    %v209 = vpack.c.b16 %v193, %v193
    %v210 = vpack.c.b16 %v194, %v194
    %v211 = vpack.c.b16 %v195, %v195
    %v212 = vpack.c.b16 %v196, %v196
    %v213 = vpack.c.b16 %v197, %v197
    %v214 = vpack.c.b16 %v198, %v198
    %v215 = vpack.c.b16 %v199, %v199
    %v216 = vpack.c.b16 %v200, %v200
    %v217 = vpack.c.b16 %v201, %v201
    %v218 = vpack.c.b16 %v202, %v202
    %235 = vst [vmem:[#allocation2] sm:$0xf] %v203
    %236 = vst [vmem:[#allocation2 + $0x4] sm:$0xf] %v204
    %237 = vst [vmem:[#allocation2 + $0x8] sm:$0xf] %v205
    %238 = vst [vmem:[#allocation2 + $0xc] sm:$0xf] %v206
    %239 = vst [vmem:[#allocation2 + $0x10] sm:$0xf] %v207
    %240 = vst [vmem:[#allocation2 + $0x14] sm:$0xf] %v208
    %241 = vst [vmem:[#allocation2 + $0x18] sm:$0xf] %v209
    %242 = vst [vmem:[#allocation2 + $0x1c] sm:$0xf] %v210
    %243 = vst [vmem:[#allocation2 + $0x20] sm:$0xf] %v211
    %244 = vst [vmem:[#allocation2 + $0x24] sm:$0xf] %v212
    %245 = vst [vmem:[#allocation2 + $0x28] sm:$0xf] %v213
    %246 = vst [vmem:[#allocation2 + $0x2c] sm:$0xf] %v214
    %247 = vst [vmem:[#allocation2 + $0x30] sm:$0xf] %v215
    %248 = vst [vmem:[#allocation2 + $0x34] sm:$0xf] %v216
    %249 = vst [vmem:[#allocation2 + $0x38] sm:$0xf] %v217
    %250 = vst [vmem:[#allocation2 + $0x3c] sm:$0xf] %v218
    // Predicated region
    $region10: #{tpu_custom_call.1} parent=1 // pred_check
      _
    $region11: #{tpu_custom_call.1} parent=1 // pred_check_branch
      %252 = sbr.rel (0) target = $region13
    $region12: #{tpu_custom_call.1} parent=1 // pred_region
      %s254 = ssub.s32 1024, 1024
      %255 = vsyncadd [#allocation3], %s254
      %s256 = sshll.u32 [#allocation2], 4
      %s257 = int_to_ptr.vmem [resolvable:$true] %s256
      %262 = dma.vmem_to_hbm [thread:$0]  %s257, 1024, %s2, [#allocation3], 64, 64, 4
    $region13: #{tpu_custom_call.1} parent=1 // pred_fallthru
      _
    // Predicated region
    $region14: #{tpu_custom_call.1} parent=1 // pred_check
      _
    $region15: #{tpu_custom_call.1} parent=1 // pred_check_branch
      %264 = sbr.rel (0) target = $region17
    $region16: #{tpu_custom_call.1} parent=1 // pred_region
      %265 = dma.done [#allocation3], 1024
    $region17: #{tpu_custom_call.1} parent=1 // pred_fallthru
      _
    %266 = vsyncpa [#allocation3], 1

</llo_original>
